<compile_context>
chip_gen: v6e
topology: v6e:2x2x1
jax: 0.10.0
libtpu: 0.0.40
codegen_flags: <defaults>
</compile_context>

<pallas_src>
import functools

import jax
import jax.numpy as jnp
from jax import lax
from jax.experimental import pallas as pl
from jax.experimental.pallas import tpu as pltpu


def _round_up(x, m):
    return (x + m - 1) // m * m


# ---------------------------------------------------------------------------
# One-time probe: pltpu.roll direction (guards against semantics ambiguity).
# ---------------------------------------------------------------------------

@functools.lru_cache(maxsize=None)
def _roll_matches_numpy() -> bool:
    """True if pltpu.roll(x, s, axis) == np.roll(x, s, axis)."""
    def probe(x_ref, o_ref):
        o_ref[...] = pltpu.roll(x_ref[...], 1, axis=1)

    x = jnp.arange(8 * 128, dtype=jnp.float32).reshape(8, 128)
    y = pl.pallas_call(
        probe, out_shape=jax.ShapeDtypeStruct((8, 128), jnp.float32))(x)
    return bool(y[0, 1] == x[0, 0])


# ---------------------------------------------------------------------------
# Fused Inception kernel (one batch element per grid step)
# ---------------------------------------------------------------------------

def _inception_kernel(x_ref, ws_ref, bs_ref, w3_ref, b3_ref, w5_ref, b5_ref,
                      wp_ref, bp_ref, o_ref, p3_ref, p5_ref, *,
                      W, HW, HWp, dims, roll_numpy):
    out1, out1_p, mid3_p, out3, mid5_p, out5, pool = dims
    f32 = jnp.float32
    bf16 = jnp.bfloat16

    x_bf = x_ref[0]                                   # (Cin_p, HWp) bf16
    x_f32 = x_bf.astype(f32)                          # for pool taps / rolls

    # ---- hoisted spatial index + border masks (shared by all branches) ----
    flat = lax.broadcasted_iota(jnp.int32, (1, HWp), 1)
    col = flat % W
    hm = {dx: (col + dx >= 0) & (col + dx < W) for dx in (-2, -1, 1, 2)}
    vm = {dy: (flat + dy * W >= 0) & (flat + dy * W < HW)
          for dy in (-2, -1, 1, 2)}

    def roll_cols(v, s):
        # result[:, i] = v[:, (i + s) % HWp]  (static s, XLU lane rotation)
        s = s % HWp
        if s == 0:
            return v
        shift = (-s) % HWp if roll_numpy else s
        return pltpu.roll(v, shift, axis=1)

    def tap_mask(dy, dx):
        if dy == 0 and dx == 0:
            return None                               # center tap: no mask
        if dy == 0:
            return hm[dx]
        if dx == 0:
            return vm[dy]
        return vm[dy] & hm[dx]

    # ---- fused stem: the three 1x1 convs (+ReLU) as one bf16 MXU matmul ---
    stem = jnp.dot(ws_ref[...], x_bf, preferred_element_type=f32)
    stem = jnp.maximum(stem + bs_ref[...], 0.0)
    y1 = stem[0:out1]                                 # branch-1 output
    m3 = stem[out1_p:out1_p + mid3_p]                 # branch-2 mid (padded)
    m5 = stem[out1_p + mid3_p:out1_p + mid3_p + mid5_p]   # branch-3 mid

    # ---- KxK "same" conv + ReLU: im2col patch in VMEM scratch, one deep dot
    def conv_same(v, wk_ref, bk_ref, K, cin_p, patch_ref):
        pad = K // 2
        for ky in range(K):
            dy = ky - pad
            vrow = roll_cols(v, dy * W)               # one row-shift per ky
            for kx in range(K):
                dx = kx - pad
                t = roll_cols(vrow, dx)               # cheap +/-1..2 shift
                m = tap_mask(dy, dx)
                if m is not None:
                    t = jnp.where(m, t, 0.0)
                r = (ky * K + kx) * cin_p
                patch_ref[r:r + cin_p, :] = t.astype(bf16)
        # Single dot with K*K*Cmid-deep contraction (feeds 256-deep MXUs).
        acc = jnp.dot(wk_ref[...], patch_ref[...], preferred_element_type=f32)
        # TODO(synk): tile Cout/HW chunks here for large channel counts.
        return jnp.maximum(acc + bk_ref[...], 0.0)

    y3 = conv_same(m3, w3_ref, b3_ref, 3, mid3_p, p3_ref)
    y5 = conv_same(m5, w5_ref, b5_ref, 5, mid5_p, p5_ref)

    # ---- 3x3 s1 p1 maxpool (separable) then 1x1 conv + ReLU ----------------
    neg = -jnp.inf
    hmax = x_f32                                      # horizontal max (3 taps)
    for dx in (-1, 1):
        hmax = jnp.maximum(hmax, jnp.where(hm[dx], roll_cols(x_f32, dx), neg))
    pooled = hmax                                     # vertical max (3 taps)
    for dy in (-1, 1):
        pooled = jnp.maximum(
            pooled, jnp.where(vm[dy], roll_cols(hmax, dy * W), neg))
    yp = jnp.dot(wp_ref[...], pooled.astype(bf16), preferred_element_type=f32)
    yp = jnp.maximum(yp + bp_ref[...], 0.0)

    # ---- write channel-concatenated output slab (lane-dense stores) -------
    od = o_ref.dtype
    c = 0
    o_ref[0, c:c + out1, :] = y1.astype(od); c += out1
    o_ref[0, c:c + out3, :] = y3.astype(od); c += out3
    o_ref[0, c:c + out5, :] = y5.astype(od); c += out5
    o_ref[0, c:c + pool, :] = yp.astype(od)


# ---------------------------------------------------------------------------
# One-time host-side weight re-layout (hoisted out of the forward path)
# ---------------------------------------------------------------------------

def prepare_inception_params(p):
    cin = p["b1_w"].shape[0]
    out1 = p["b1_w"].shape[1]
    mid3 = p["b2_w1"].shape[1]
    out3 = p["b2_w3"].shape[-1]
    mid5 = p["b3_w1"].shape[1]
    out5 = p["b3_w5"].shape[-1]
    pool = p["b4_w"].shape[1]

    cin_p = _round_up(cin, 8)
    out1_p = _round_up(out1, 8)
    mid3_p = _round_up(mid3, 16)      # 16 => bf16-tile-aligned scratch writes
    mid5_p = _round_up(mid5, 16)

    def pad_io(w, cip, cop):          # (cin, cout) -> (cin_p, cout_p)
        return jnp.pad(w, ((0, cip - w.shape[0]), (0, cop - w.shape[1])))

    def pad_vec(b, cp):
        return jnp.pad(b, ((0, cp - b.shape[0]),))

    # Fuse the three stem 1x1 convs into one (C_stem_p, Cin_p) bf16 weight.
    w_stem = jnp.concatenate(
        [pad_io(p["b1_w"], cin_p, out1_p),
         pad_io(p["b2_w1"], cin_p, mid3_p),
         pad_io(p["b3_w1"], cin_p, mid5_p)], axis=1).T
    b_stem = jnp.concatenate(
        [pad_vec(p["b1_b"], out1_p),
         pad_vec(p["b2_b1"], mid3_p),
         pad_vec(p["b3_b1"], mid5_p)])[:, None]

    def prep_k(w, cip):               # (K,K,cin,cout) -> (cout, K*K*cin_p)
        K, _, ci, co = w.shape
        w = jnp.pad(w, ((0, 0), (0, 0), (0, cip - ci), (0, 0)))
        return w.reshape(K * K * cip, co).T.astype(jnp.bfloat16)

    return {
        "cin_p": cin_p,
        "dims": (out1, out1_p, mid3_p, out3, mid5_p, out5, pool),
        "w_stem": w_stem.astype(jnp.bfloat16),
        "b_stem": b_stem.astype(jnp.float32),
        "w3": prep_k(p["b2_w3"], mid3_p),
        "b3": p["b2_b3"][:, None].astype(jnp.float32),
        "w5": prep_k(p["b3_w5"], mid5_p),
        "b5": p["b3_b5"][:, None].astype(jnp.float32),
        "wp": jnp.pad(p["b4_w"], ((0, cin_p - cin), (0, 0))).T.astype(jnp.bfloat16),
        "bp": p["b4_b"][:, None].astype(jnp.float32),
    }


# ---------------------------------------------------------------------------
# Wrapper: single pallas_call per batch, NCHW in/out
# ---------------------------------------------------------------------------

def inception_forward(x_nchw, prep):
    """Matches inception_module.forward; input/output are NCHW."""
    N, Cin, H, W = x_nchw.shape
    HW = H * W
    HWp = _round_up(HW, 128)                        # lane-dense output slab
    cin_p = prep["cin_p"]
    out1, out1_p, mid3_p, out3, mid5_p, out5, pool = prep["dims"]
    c_total = out1 + out3 + out5 + pool
    c_stem_p = out1_p + mid3_p + mid5_p

    x = x_nchw.reshape(N, Cin, HW).astype(jnp.bfloat16)
    x = jnp.pad(x, ((0, 0), (0, cin_p - Cin), (0, HWp - HW)))

    kern = functools.partial(
        _inception_kernel, W=W, HW=HW, HWp=HWp, dims=prep["dims"],
        roll_numpy=_roll_matches_numpy())

    full2 = lambda n: (0, 0)
    out = pl.pallas_call(
        kern,
        out_shape=jax.ShapeDtypeStruct((N, c_total, HWp), jnp.float32),
        grid=(N,),
        in_specs=[
            pl.BlockSpec((1, cin_p, HWp), lambda n: (n, 0, 0)),
            pl.BlockSpec((c_stem_p, cin_p), full2),
            pl.BlockSpec((c_stem_p, 1), full2),
            pl.BlockSpec((out3, 9 * mid3_p), full2),
            pl.BlockSpec((out3, 1), full2),
            pl.BlockSpec((out5, 25 * mid5_p), full2),
            pl.BlockSpec((out5, 1), full2),
            pl.BlockSpec((pool, cin_p), full2),
            pl.BlockSpec((pool, 1), full2),
        ],
        out_specs=pl.BlockSpec((1, c_total, HWp), lambda n: (n, 0, 0)),
        scratch_shapes=[
            pltpu.VMEM((9 * mid3_p, HWp), jnp.bfloat16),   # 3x3 im2col patch
            pltpu.VMEM((25 * mid5_p, HWp), jnp.bfloat16),  # 5x5 im2col patch
        ],
        compiler_params=pltpu.CompilerParams(
            dimension_semantics=("parallel",)),
    )(x, prep["w_stem"], prep["b_stem"], prep["w3"], prep["b3"],
      prep["w5"], prep["b5"], prep["wp"], prep["bp"])

    return out[:, :, :HW].reshape(N, c_total, H, W)


# ---------------------------------------------------------------------------
# Parameter init (HWIO conv weights)
# ---------------------------------------------------------------------------

def init_inception_params(key, in_dim, out_dim_1, mid_dim_3, out_dim_3,
                          mid_dim_5, out_dim_5, pool):
    ks = jax.random.split(key, 12)

    def w1x1(k, cin, cout):
        return jax.random.normal(k, (cin, cout), jnp.float32) * 0.1

    def wkxk(k, K, cin, cout):
        return jax.random.normal(k, (K, K, cin, cout), jnp.float32) * 0.1

    def bias(k, c):
        return jax.random.normal(k, (c,), jnp.float32) * 0.01

    return {
        "b1_w": w1x1(ks[0], in_dim, out_dim_1), "b1_b": bias(ks[1], out_dim_1),
        "b2_w1": w1x1(ks[2], in_dim, mid_dim_3), "b2_b1": bias(ks[3], mid_dim_3),
        "b2_w3": wkxk(ks[4], 3, mid_dim_3, out_dim_3), "b2_b3": bias(ks[5], out_dim_3),
        "b3_w1": w1x1(ks[6], in_dim, mid_dim_5), "b3_b1": bias(ks[7], mid_dim_5),
        "b3_w5": wkxk(ks[8], 5, mid_dim_5, out_dim_5), "b3_b5": bias(ks[9], out_dim_5),
        "b4_w": w1x1(ks[10], in_dim, pool), "b4_b": bias(ks[11], pool),
    }


# ---------------------------------------------------------------------------
# Pure-JAX reference with the same bf16 quantisation points as the kernel
# (inputs, weights, mid activations rounded to bf16; accumulation in f32)
# ---------------------------------------------------------------------------

def _bf16(a):
    return a.astype(jnp.bfloat16).astype(jnp.float32)


def _ref_conv(x, w, b, pad):
    y = lax.conv_general_dilated(
        x, w, window_strides=(1, 1), padding=[(pad, pad), (pad, pad)],
        dimension_numbers=("NHWC", "HWIO", "NHWC"))
    return jnp.maximum(y + b, 0.0)


def inception_reference(x_nchw, p):
    x = _bf16(jnp.transpose(x_nchw, (0, 2, 3, 1)))
    out1 = _ref_conv(x, _bf16(p["b1_w"])[None, None], p["b1_b"], 0)
    mid2 = _bf16(_ref_conv(x, _bf16(p["b2_w1"])[None, None], p["b2_b1"], 0))
    out2 = _ref_conv(mid2, _bf16(p["b2_w3"]), p["b2_b3"], 1)
    mid3 = _bf16(_ref_conv(x, _bf16(p["b3_w1"])[None, None], p["b3_b1"], 0))
    out3 = _ref_conv(mid3, _bf16(p["b3_w5"]), p["b3_b5"], 2)
    pooled = lax.reduce_window(
        x, -jnp.inf, lax.max, (1, 3, 3, 1), (1, 1, 1, 1),
        padding=((0, 0), (1, 1), (1, 1), (0, 0)))
    out4 = _ref_conv(pooled, _bf16(p["b4_w"])[None, None], p["b4_b"], 0)
    out = jnp.concatenate([out1, out2, out3, out4], axis=-1)
    return jnp.transpose(out, (0, 3, 1, 2))


if __name__ == "__main__":
    # Small config: in_dim=4, out_dim_1=8, mid_dim_3=4, out_dim_3=8,
    #               mid_dim_5=4, out_dim_5=8, pool=8  -> 32 output channels.
    key = jax.random.PRNGKey(0)
    k_x, k_p = jax.random.split(key)

    N, C, H, W = 2, 4, 16, 16
    x = jax.random.normal(k_x, (N, C, H, W), jnp.float32)
    params = init_inception_params(k_p, C, 8, 4, 8, 4, 8, 8)

    prep = prepare_inception_params(params)      # one-time weight re-layout
    out = jax.block_until_ready(inception_forward(x, prep))

    ref = inception_reference(x, params)
    assert out.shape == (N, 32, H, W), out.shape
    err = float(jnp.max(jnp.abs(out - ref)))
    assert jnp.allclose(out, ref, atol=1e-2, rtol=1e-2), f"mismatch: {err}"

    print("KERNEL_OK")
</pallas_src>

<mosaic_0001>
module attributes {stable_mosaic.version = 11 : i64} {
  func.func @probe(%arg0: memref<8x128xf32, #tpu.memory_space<vmem>>, %arg1: memref<8x128xf32, #tpu.memory_space<vmem>>) attributes {dimension_semantics = [], scalar_prefetch = 0 : i64, scratch_operands = 0 : i64, tpu.core_type = #tpu.core_type<tc>} {
    %c0 = arith.constant 0 : index
    %c0_0 = arith.constant 0 : index
    %0 = vector.load %arg0[%c0, %c0_0] : memref<8x128xf32, #tpu.memory_space<vmem>>, vector<8x128xf32>
    %c1_i32 = arith.constant 1 : i32
    %1 = tpu.dynamic_rotate %0 by %c1_i32 dim 1 : vector<8x128xf32>, i32 -> vector<8x128xf32>
    %c0_1 = arith.constant 0 : index
    %c0_2 = arith.constant 0 : index
    %2 = vector.load %arg1[%c0_1, %c0_2] : memref<8x128xf32, #tpu.memory_space<vmem>>, vector<8x128xf32>
    tpu.vector_store %arg1[%c0_1, %c0_2], %1 {strides = array<i32>} : memref<8x128xf32, #tpu.memory_space<vmem>>, vector<8x128xf32>,
    return
  }
}

</mosaic_0001>

<llo_original>
// kernel: tpu_custom_call.1
$region0: #{tpu_custom_call.1}
  #allocation0 [shape = 'u32[]', space=smem, size = 0x4, offset = 0x4, fixed_abs, tag = 'smem constant byte address 0x4 - core index']
  #allocation1 [shape = 'u32[144,128]{1,0:T(1,128)}', space=vmem, size = 0x12000, scoped, tag = 'internal scratch']
  %s0 = inlined_call_operand.hbm [shape: f32[8,128], index: 0, kind: input, shape index: {}]
  %s1 = inlined_call_operand.hbm [shape: f32[8,128], index: 1, kind: output, shape index: {}]
  %s2 = sld [smem:[#allocation0]]
  $region18: #{tpu_custom_call.1} parent=0
    _
  %s4 = ssub.s32 1, %s2
  %s5 = scalar_select 0, %s4, %s2
  $region1: #{tpu_custom_call.1} parent=0
    #allocation2 [shape = 'u8[4096]{0}', space=vmem, size = 0x1000, scoped, tag = 'input window, operand 0, single buffered']
    #allocation3 [shape = 's32[1]{0}', space=sflag, size = 0x4, scoped, tag = 'scoped memory for tpu_custom_call.1']
    #allocation4 [shape = 's32[1]{0}', space=sflag, size = 0x4, scoped, tag = 'scoped memory for tpu_custom_call.1']
    #allocation5 [shape = 'u8[4096]{0}', space=vmem, size = 0x1000, scoped, tag = 'output window, operand 0, single buffered']
    %6 = vsyncpa [#allocation3], 0
    %7 = vsyncpa [#allocation4], 0
    // Predicated region
    $region2: #{tpu_custom_call.1} parent=1 // pred_check
      _
    $region3: #{tpu_custom_call.1} parent=1 // pred_check_branch
      %9 = sbr.rel (0) target = $region5
    $region4: #{tpu_custom_call.1} parent=1 // pred_region
      %s11 = ssub.s32 128, 128
      %12 = vsyncadd [#allocation3], %s11
      %s14 = sshll.u32 [#allocation2], 4
      %s15 = int_to_ptr.vmem [resolvable:$true] %s14
      %17 = dma.hbm_to_vmem [thread:$0]  %s0, 128, %s15, [#allocation3]
    $region5: #{tpu_custom_call.1} parent=1 // pred_fallthru
      _
    // Predicated region
    $region6: #{tpu_custom_call.1} parent=1 // pred_check
      _
    $region7: #{tpu_custom_call.1} parent=1 // pred_check_branch
      %19 = sbr.rel (0) target = $region9
    $region8: #{tpu_custom_call.1} parent=1 // pred_region
      %20 = dma.done [#allocation3], 128
    $region9: #{tpu_custom_call.1} parent=1 // pred_fallthru
      _
    %v21 = vld [vmem:[#allocation2] sm:$0xff]
    %22 = vrot.lane.b32.xlu0 %v21, 1
    %v23 = vpop.permute.xlu0 %22
    %24 = vst [vmem:[#allocation5] sm:$0xff] %v23
    // Predicated region
    $region10: #{tpu_custom_call.1} parent=1 // pred_check
      _
    $region11: #{tpu_custom_call.1} parent=1 // pred_check_branch
      %26 = sbr.rel (0) target = $region13
    $region12: #{tpu_custom_call.1} parent=1 // pred_region
      %s28 = ssub.s32 128, 128
      %29 = vsyncadd [#allocation4], %s28
      %s31 = sshll.u32 [#allocation5], 4
      %s32 = int_to_ptr.vmem [resolvable:$true] %s31
      %34 = dma.vmem_to_hbm [thread:$0]  %s32, 128, %s1, [#allocation4]
    $region13: #{tpu_custom_call.1} parent=1 // pred_fallthru
      _
    // Predicated region
    $region14: #{tpu_custom_call.1} parent=1 // pred_check
      _
    $region15: #{tpu_custom_call.1} parent=1 // pred_check_branch
      %36 = sbr.rel (0) target = $region17
    $region16: #{tpu_custom_call.1} parent=1 // pred_region
      %37 = dma.done [#allocation4], 128
    $region17: #{tpu_custom_call.1} parent=1 // pred_fallthru
      _
    %38 = vsyncpa [#allocation3], 1
    %39 = vsyncpa [#allocation4], 1

</llo_original>
